<compile_context>
chip_gen: v7x
topology: tpu7x:2x2x1
jax: 0.10.0
libtpu: 0.0.40
codegen_flags: <defaults>
</compile_context>

<pallas_src>
import numpy as np
import jax
import jax.numpy as jnp
from jax import lax
from jax.experimental import pallas as pl
from jax.experimental.pallas import tpu as pltpu


# Tap order matches a row-major flatten of the 3x3 kernel: t = ky*3 + kx.
_TAPS = tuple((ky - 1, kx - 1) for ky in range(3) for kx in range(3))

_VMEM_SPEC = pl.BlockSpec(memory_space=pltpu.MemorySpace.VMEM)


# ----------------------------------------------------------------------------
# Roll-direction self-check (pins pltpu.roll fetch direction on the hardware).
# Runs eagerly, once, BEFORE the jitted forward is traced, on the same backend,
# so the direction baked into the trace is the one measured on this device.
# ----------------------------------------------------------------------------
_ROLL_JNP_STYLE = None  # True  -> roll(x, s)[i] == x[(i - s) % n]   (jnp.roll)
                        # False -> roll(x, s)[i] == x[(i + s) % n]


def _roll_probe_kernel(x_ref, o_ref):
    o_ref[...] = pltpu.roll(x_ref[...], shift=1, axis=1)


def _detect_roll_direction():
    global _ROLL_JNP_STYLE
    if _ROLL_JNP_STYLE is None:
        x = lax.broadcasted_iota(jnp.float32, (8, 128), 1)
        out = pl.pallas_call(
            _roll_probe_kernel,
            out_shape=jax.ShapeDtypeStruct((8, 128), jnp.float32),
            in_specs=[_VMEM_SPEC],
            out_specs=_VMEM_SPEC,
        )(x)
        _ROLL_JNP_STYLE = bool(np.asarray(out)[0, 0] == 127.0)
    return _ROLL_JNP_STYLE


def _fetch_shift(s, n):
    """Shift argument so that rolled[i] == x[(i + s) mod n]."""
    assert _ROLL_JNP_STYLE is not None
    return (-s) % n if _ROLL_JNP_STYLE else s % n


# ----------------------------------------------------------------------------
# Host-side parameter / mask preparation (pure layout work, no FLOPs)
# ----------------------------------------------------------------------------
def _round_up(x, m):
    return (x + m - 1) // m * m


def _pack_conv_weight(w_oihw, b, k_pad):
    """PyTorch OIHW (Cout, Cin, 3, 3) + bias (Cout,) -> bf16 (Cout, k_pad).

    Column layout: col[t*Cin + c] = w[:, c, ky, kx] with t = ky*3 + kx,
    col[9*Cin] = bias (multiplied by a constant-ones stack row), rest zero.
    """
    co, ci = w_oihw.shape[0], w_oihw.shape[1]
    flat = jnp.transpose(w_oihw, (0, 2, 3, 1)).reshape(co, 9 * ci)
    packed = jnp.zeros((co, k_pad), jnp.float32)
    packed = packed.at[:, : 9 * ci].set(flat)
    packed = packed.at[:, 9 * ci].set(b)
    return packed.astype(jnp.bfloat16)


def _make_boundary_masks(B, H, W):
    """(9, 1, B*H*W) float 0/1 masks: 1 where the shifted tap stays in-bounds."""
    yy, xx = np.divmod(np.arange(H * W), W)
    masks = np.zeros((9, 1, B * H * W), np.float32)
    for t, (dy, dx) in enumerate(_TAPS):
        ok = ((yy + dy >= 0) & (yy + dy < H) & (xx + dx >= 0) & (xx + dx < W))
        masks[t, 0, :] = np.tile(ok.astype(np.float32), B)
    return jnp.asarray(masks)


def prepare_params(raw, B, H, W):
    """raw PyTorch-layout weights -> fused-kernel layout (packed bf16 + masks)."""
    cin_tot = raw["lstm"][0][0].shape[1]           # input_size + hidden_size
    k_pad = _round_up(9 * cin_tot + 1, 8)
    lstm_w = [_pack_conv_weight(w, b, k_pad) for (w, b) in raw["lstm"]]
    wmu, bmu = raw["mu"]
    wlv, blv = raw["logvar"]
    head_w = _pack_conv_weight(jnp.concatenate([wmu, wlv], axis=0),
                               jnp.concatenate([bmu, blv]), k_pad)
    return {"lstm_w": lstm_w, "head_w": head_w,
            "masks": _make_boundary_masks(B, H, W)}


def init_hidden(n_layers, B, H, W, hidden_size):
    """Hidden state lives in kernel layout (C, B*H*W) so steps chain cheaply."""
    return [(jnp.zeros((hidden_size, B * H * W), jnp.float32),
             jnp.zeros((hidden_size, B * H * W), jnp.float32))
            for _ in range(n_layers)]


# ----------------------------------------------------------------------------
# Fused Pallas kernel: n_layers ConvLSTM cells + gaussian head + reparameterize
# ----------------------------------------------------------------------------
def _build_kernel(n_layers, W, NB, cin, hd, co, k_pad):
    ct_layer = cin + hd                  # channels per tap in the LSTM convs

    def write_tap_slabs(stack_ref, parts, masks_ref):
        """Write the 9 rolled+masked slabs of `parts` into the im2col scratch.

        parts: list of (C_p, NB) f32 values (channel order = torch.cat order).
        Rows [t*sum(C_p) + offset] are 8-aligned, so all stores are full-tile.
        """
        ctot = sum(int(p.shape[0]) for p in parts)
        for t, (dy, dx) in enumerate(_TAPS):
            s = dy * W + dx
            off = t * ctot
            for p in parts:
                cp = int(p.shape[0])
                if s == 0:
                    slab = p                                    # center tap: no shift/mask
                else:
                    slab = pltpu.roll(p, shift=_fetch_shift(s, NB), axis=1) * masks_ref[t]
                stack_ref[off:off + cp, :] = slab
                off += cp

    n_in = 2 + 3 * n_layers + 2
    n_out = 3 + 2 * n_layers

    def kernel(*refs):
        x_ref, masks_ref = refs[0], refs[1]
        layer_refs = [refs[2 + 3 * l: 5 + 3 * l] for l in range(n_layers)]   # (w, h, c)
        head_w_ref = refs[2 + 3 * n_layers]
        eps_ref = refs[3 + 3 * n_layers]
        z_ref, mu_ref, lv_ref = refs[n_in: n_in + 3]
        hc_out = [(refs[n_in + 3 + 2 * l], refs[n_in + 4 + 2 * l]) for l in range(n_layers)]
        stack_ref = refs[n_in + n_out]

        # Tail rows of the stack: row 9*ct_layer is the constant-ones bias row
        # for the LSTM convs; rows above it are never written by any slab and
        # must be zero (their weight columns are zero, and 0 * garbage != 0
        # only if garbage were NaN/Inf from uninitialized VMEM).
        tail = k_pad - 9 * ct_layer
        row_sel = lax.broadcasted_iota(jnp.int32, (tail, NB), 0) == 0
        stack_ref[9 * ct_layer:k_pad, :] = jnp.where(row_sel, 1.0, 0.0).astype(jnp.float32)

        h_in = x_ref[...]                                       # (cin, NB)
        for l in range(n_layers):
            w_ref, h_ref, c_ref = layer_refs[l]
            # channel order [input, hidden] matches torch.cat([input, h_cur], dim=1)
            write_tap_slabs(stack_ref, [h_in, h_ref[...]], masks_ref)
            acc = jnp.dot(w_ref[...], stack_ref[...].astype(jnp.bfloat16),
                          preferred_element_type=jnp.float32)   # (4*hd, NB), bias folded in
            ifo = jax.nn.sigmoid(acc[:3 * hd, :])               # one EUP stream for i/f/o
            g = jnp.tanh(acc[3 * hd:, :])
            i = ifo[0 * hd:1 * hd, :]
            f = ifo[1 * hd:2 * hd, :]
            o = ifo[2 * hd:3 * hd, :]
            c_next = f * c_ref[...] + i * g
            h_next = o * jnp.tanh(c_next)
            h_out_ref, c_out_ref = hc_out[l]
            h_out_ref[...] = h_next
            c_out_ref[...] = c_next
            h_in = h_next

        # Gaussian head: mu & logvar fused into one conv.  Its bias row sits at
        # row 9*hd; rows above it hold stale (finite) LSTM slabs whose head
        # weight columns are zero, so they contribute nothing.
        write_tap_slabs(stack_ref, [h_in], masks_ref)
        stack_ref[9 * hd: 9 * hd + 1, :] = jnp.ones((1, NB), jnp.float32)
        head = jnp.dot(head_w_ref[...], stack_ref[...].astype(jnp.bfloat16),
                       preferred_element_type=jnp.float32)      # (2*co, NB)
        mu = head[:co, :]
        lv = head[co:, :]
        z_ref[...] = eps_ref[...] * jnp.exp(0.5 * lv) + mu
        mu_ref[...] = mu
        lv_ref[...] = lv

    return kernel


# ----------------------------------------------------------------------------
# Jitted host wrapper
# ----------------------------------------------------------------------------
def _forward_impl(params, x_nchw, hidden, eps_nchw):
    B, cin, H, W = x_nchw.shape
    NB = B * H * W
    n_layers = len(params["lstm_w"])
    hd = hidden[0][0].shape[0]
    co = eps_nchw.shape[1]
    k_pad = params["lstm_w"][0].shape[1]

    x_flat = jnp.transpose(x_nchw, (1, 0, 2, 3)).reshape(cin, NB)
    eps_flat = jnp.transpose(eps_nchw, (1, 0, 2, 3)).reshape(co, NB)

    inputs = [x_flat, params["masks"]]
    for w, (h, c) in zip(params["lstm_w"], hidden):
        inputs += [w, h, c]
    inputs += [params["head_w"], eps_flat]

    out_shape = ([jax.ShapeDtypeStruct((co, NB), jnp.float32)] * 3
                 + [jax.ShapeDtypeStruct((hd, NB), jnp.float32)] * (2 * n_layers))

    # Alias incoming (h, c) buffers to the new-hidden outputs (P8).
    aliases = {}
    for l in range(n_layers):
        aliases[3 + 3 * l] = 3 + 2 * l      # h_l  -> h_new_l
        aliases[4 + 3 * l] = 4 + 2 * l      # c_l  -> c_new_l

    kernel = _build_kernel(n_layers, W, NB, cin, hd, co, k_pad)
    outs = pl.pallas_call(
        kernel,
        out_shape=out_shape,
        in_specs=[_VMEM_SPEC] * len(inputs),
        out_specs=[_VMEM_SPEC] * len(out_shape),
        scratch_shapes=[pltpu.VMEM((k_pad, NB), jnp.float32)],   # shared im2col stack
        input_output_aliases=aliases,
    )(*inputs)

    z_f, mu_f, lv_f = outs[0], outs[1], outs[2]
    new_hidden = [(outs[3 + 2 * l], outs[4 + 2 * l]) for l in range(n_layers)]

    def to_nchw(t):
        return jnp.transpose(t.reshape(-1, B, H, W), (1, 0, 2, 3))

    return to_nchw(z_f), to_nchw(mu_f), to_nchw(lv_f), new_hidden


_forward_jit = jax.jit(_forward_impl)


def gaussian_conv_lstm_forward(params, x, hidden, eps):
    """x/eps in NCHW; hidden in kernel layout (C, B*H*W).  Returns NCHW z/mu/lv + new hidden."""
    _detect_roll_direction()     # eager probe; must run before the jit trace
    return _forward_jit(params, x, hidden, eps)


# ----------------------------------------------------------------------------
# Pure-JAX reference (NCHW, same math as the PyTorch module) for validation
# ----------------------------------------------------------------------------
def _conv2d_ref(x, w, b):
    y = lax.conv_general_dilated(
        x, w, (1, 1), ((1, 1), (1, 1)),
        dimension_numbers=("NCHW", "OIHW", "NCHW"),
        precision=lax.Precision.HIGHEST)
    return y + b[None, :, None, None]


def reference_forward(raw, x, hidden_nchw, eps):
    h_in = x
    for (w, b), (h, c) in zip(raw["lstm"], hidden_nchw):
        combined = jnp.concatenate([h_in, h], axis=1)
        cc = _conv2d_ref(combined, w, b)
        cc_i, cc_f, cc_o, cc_g = jnp.split(cc, 4, axis=1)
        i = jax.nn.sigmoid(cc_i)
        f = jax.nn.sigmoid(cc_f)
        o = jax.nn.sigmoid(cc_o)
        g = jnp.tanh(cc_g)
        c_next = f * c + i * g
        h_next = o * jnp.tanh(c_next)
        h_in = h_next
    mu = _conv2d_ref(h_in, *raw["mu"])
    lv = _conv2d_ref(h_in, *raw["logvar"])
    z = eps * jnp.exp(0.5 * lv) + mu
    return z, mu, lv


# ----------------------------------------------------------------------------
if __name__ == "__main__":
    # NOTE: the PyTorch module stacks ConvLSTMCell(input_size, hidden_size)
    # layers, which only type-checks for n_layers > 1 when
    # input_size == hidden_size, so they are chosen equal here.
    B, H, W = 2, 16, 16
    input_size = hidden_size = 8
    output_size = 4
    n_layers = 2

    key = jax.random.PRNGKey(0)
    ks = list(jax.random.split(key, 2 * n_layers + 5))

    # Deterministic synthetic parameters (PyTorch OIHW layout + 1-D biases).
    raw = {"lstm": [], "mu": None, "logvar": None}
    for li in range(n_layers):
        w = 0.1 * jax.random.normal(
            ks[2 * li], (4 * hidden_size, input_size + hidden_size, 3, 3), jnp.float32)
        b = 0.1 * jax.random.normal(ks[2 * li + 1], (4 * hidden_size,), jnp.float32)
        raw["lstm"].append((w, b))
    kmu_w, kmu_b, klv_w, klv_b, kdata = ks[2 * n_layers:2 * n_layers + 5]
    raw["mu"] = (0.1 * jax.random.normal(kmu_w, (output_size, hidden_size, 3, 3), jnp.float32),
                 0.1 * jax.random.normal(kmu_b, (output_size,), jnp.float32))
    raw["logvar"] = (0.1 * jax.random.normal(klv_w, (output_size, hidden_size, 3, 3), jnp.float32),
                     0.1 * jax.random.normal(klv_b, (output_size,), jnp.float32))
    # TODO(synk): the module's `self.embed` conv is never used in forward(), so it is omitted.

    params = prepare_params(raw, B, H, W)

    kx, keps = jax.random.split(kdata, 2)
    x = jax.random.normal(kx, (B, input_size, H, W), jnp.float32)
    # eps replaces torch's `.normal_()` draw with a deterministic JAX normal.
    eps = jax.random.normal(keps, (B, output_size, H, W), jnp.float32)

    # init_hidden(): zeros for (h, c) of every layer.
    hidden = init_hidden(n_layers, B, H, W, hidden_size)
    hidden_nchw = [(jnp.zeros((B, hidden_size, H, W), jnp.float32),
                    jnp.zeros((B, hidden_size, H, W), jnp.float32))
                   for _ in range(n_layers)]

    z, mu, lv, new_hidden = gaussian_conv_lstm_forward(params, x, hidden, eps)
    jax.block_until_ready((z, mu, lv, new_hidden))

    z_r, mu_r, lv_r = reference_forward(raw, x, hidden_nchw, eps)
    # bf16 MXU operands vs. the f32 HIGHEST reference => expected deviation is
    # O(5e-3); semantic bugs would be O(0.1-1), so 2e-2 still validates.
    np.testing.assert_allclose(np.asarray(mu), np.asarray(mu_r), rtol=2e-2, atol=2e-2)
    np.testing.assert_allclose(np.asarray(lv), np.asarray(lv_r), rtol=2e-2, atol=2e-2)
    np.testing.assert_allclose(np.asarray(z), np.asarray(z_r), rtol=2e-2, atol=2e-2)

    print("KERNEL_OK")
</pallas_src>

<mosaic_0001>
module attributes {stable_mosaic.version = 11 : i64} {
  func.func @_roll_probe_kernel(%arg0: memref<8x128xf32, #tpu.memory_space<vmem>>, %arg1: memref<8x128xf32, #tpu.memory_space<vmem>>) attributes {dimension_semantics = [], scalar_prefetch = 0 : i64, scratch_operands = 0 : i64, tpu.core_type = #tpu.core_type<tc>} {
    %c0 = arith.constant 0 : index
    %c0_0 = arith.constant 0 : index
    %0 = vector.load %arg0[%c0, %c0_0] : memref<8x128xf32, #tpu.memory_space<vmem>>, vector<8x128xf32>
    %c1_i32 = arith.constant 1 : i32
    %1 = tpu.dynamic_rotate %0 by %c1_i32 dim 1 : vector<8x128xf32>, i32 -> vector<8x128xf32>
    %c0_1 = arith.constant 0 : index
    %c0_2 = arith.constant 0 : index
    %2 = vector.load %arg1[%c0_1, %c0_2] : memref<8x128xf32, #tpu.memory_space<vmem>>, vector<8x128xf32>
    tpu.vector_store %arg1[%c0_1, %c0_2], %1 {strides = array<i32>} : memref<8x128xf32, #tpu.memory_space<vmem>>, vector<8x128xf32>,
    return
  }
}

</mosaic_0001>

<llo_original>
// kernel: tpu_custom_call.1
$region0: #{tpu_custom_call.1}
  #allocation0 [shape = 'u32[]', space=smem, size = 0x4, offset = 0x4, fixed_abs, tag = 'smem constant byte address 0x4 - core index']
  #allocation1 [shape = 'u32[144,128]{1,0:T(1,128)}', space=vmem, size = 0x12000, scoped, tag = 'internal scratch']
  %s0 = inlined_call_operand.hbm [shape: f32[8,128], index: 0, kind: input, shape index: {}]
  %s1 = inlined_call_operand.hbm [shape: f32[8,128], index: 1, kind: output, shape index: {}]
  %s2 = sld [smem:[#allocation0]]
  $region18: #{tpu_custom_call.1} parent=0
    _
  %s4 = ssub.s32 1, %s2
  %s5 = scalar_select 0, %s4, %s2
  $region1: #{tpu_custom_call.1} parent=0
    #allocation2 [shape = 'u8[4096]{0}', space=vmem, size = 0x1000, scoped, tag = 'input window, operand 0, single buffered']
    #allocation3 [shape = 's32[1]{0}', space=sflag, size = 0x4, scoped, tag = 'scoped memory for tpu_custom_call.1']
    #allocation4 [shape = 's32[1]{0}', space=sflag, size = 0x4, scoped, tag = 'scoped memory for tpu_custom_call.1']
    #allocation5 [shape = 'u8[4096]{0}', space=vmem, size = 0x1000, scoped, tag = 'output window, operand 0, single buffered']
    %6 = vsyncpa [#allocation3], 0
    %7 = vsyncpa [#allocation4], 0
    // Predicated region
    $region2: #{tpu_custom_call.1} parent=1 // pred_check
      _
    $region3: #{tpu_custom_call.1} parent=1 // pred_check_branch
      %9 = sbr.rel (0) target = $region5
    $region4: #{tpu_custom_call.1} parent=1 // pred_region
      %s11 = ssub.s32 128, 128
      %12 = vsyncadd [#allocation3], %s11
      %s14 = sshll.u32 [#allocation2], 4
      %s15 = int_to_ptr.vmem [resolvable:$true] %s14
      %17 = dma.hbm_to_vmem [thread:$0]  %s0, 128, %s15, [#allocation3]
    $region5: #{tpu_custom_call.1} parent=1 // pred_fallthru
      _
    // Predicated region
    $region6: #{tpu_custom_call.1} parent=1 // pred_check
      _
    $region7: #{tpu_custom_call.1} parent=1 // pred_check_branch
      %19 = sbr.rel (0) target = $region9
    $region8: #{tpu_custom_call.1} parent=1 // pred_region
      %20 = dma.done [#allocation3], 128
    $region9: #{tpu_custom_call.1} parent=1 // pred_fallthru
      _
    %v21 = vld [vmem:[#allocation2] sm:$0xff]
    %22 = vrot.lane.b32.xlu0 %v21, 1
    %v23 = vpop.permute.xlu0 %22
    %24 = vst [vmem:[#allocation5] sm:$0xff] %v23
    // Predicated region
    $region10: #{tpu_custom_call.1} parent=1 // pred_check
      _
    $region11: #{tpu_custom_call.1} parent=1 // pred_check_branch
      %26 = sbr.rel (0) target = $region13
    $region12: #{tpu_custom_call.1} parent=1 // pred_region
      %s28 = ssub.s32 128, 128
      %29 = vsyncadd [#allocation4], %s28
      %s31 = sshll.u32 [#allocation5], 4
      %s32 = int_to_ptr.vmem [resolvable:$true] %s31
      %34 = dma.vmem_to_hbm [thread:$0]  %s32, 128, %s1, [#allocation4]
    $region13: #{tpu_custom_call.1} parent=1 // pred_fallthru
      _
    // Predicated region
    $region14: #{tpu_custom_call.1} parent=1 // pred_check
      _
    $region15: #{tpu_custom_call.1} parent=1 // pred_check_branch
      %36 = sbr.rel (0) target = $region17
    $region16: #{tpu_custom_call.1} parent=1 // pred_region
      %37 = dma.done [#allocation4], 128
    $region17: #{tpu_custom_call.1} parent=1 // pred_fallthru
      _
    %38 = vsyncpa [#allocation3], 1
    %39 = vsyncpa [#allocation4], 1

</llo_original>
